<compile_context>
chip_gen: v7x
topology: tpu7x:2x2x1
jax: 0.10.0
libtpu: 0.0.40
codegen_flags: <defaults>
</compile_context>

<pallas_src>
import jax
import jax.numpy as jnp
from jax.experimental import pallas as pl
from jax.experimental.pallas import tpu as pltpu

INPUT_SIZE = 18
HIDDEN_SIZE = 32
OUTPUT_SIZE = 1
MAX_BATCH_TILE = 8192  # 2 x lane-padded x buffers ~8 MiB: fits default scoped VMEM


def _sigmoid_1eup(z):
    # Single-transcendental sigmoid: one tanh EUP push per element.
    return 0.5 * jnp.tanh(0.5 * z) + 0.5


def lstm_kernel(x_ref, w_igo_ref, b_ref, w_lin_ref, b_lin_ref, out_ref):
    # gates^T = W_igo (3H, I) @ x^T (I, bt): contract dim 1 of both operands so x
    # stays in its natural (bt, I) layout and batch lands on the lane axis.
    gates = jax.lax.dot_general(
        w_igo_ref[...], x_ref[...],
        dimension_numbers=(((1,), (1,)), ((), ())),
        preferred_element_type=jnp.float32) + b_ref[...]          # (3H, bt)

    H = HIDDEN_SIZE
    # Live gates only (forget gate was trimmed in prepare_params); 32-row slices
    # are sublane aligned.
    i_g = _sigmoid_1eup(gates[0 * H:1 * H, :])
    g_g = jnp.tanh(gates[1 * H:2 * H, :])
    o_g = _sigmoid_1eup(gates[2 * H:3 * H, :])
    h = o_g * jnp.tanh(i_g * g_g)                                 # (H, bt)

    # Output projection: (1, H) @ (H, bt) -> (1, bt); lane-dense store.
    out_ref[...] = (jnp.dot(w_lin_ref[...], h,
                            preferred_element_type=jnp.float32)
                    + b_lin_ref[0])


def prepare_params(w_ih, w_hh, b_ih, b_hh, w_lin, b_lin):
    """One-time parameter prep, hoisted out of the per-call forward path.

    h0 = c0 = 0 means the recurrent matmul with w_hh vanishes (only b_hh survives,
    folded into the bias) and the forget gate is dead, so its weight/bias rows
    (PyTorch rows [H:2H]) are dropped entirely: the kernel sees a (3H, I) weight
    with gate order i, g, o.
    """
    del w_hh  # unused: h0 == 0
    H = HIDDEN_SIZE
    live = jnp.concatenate([jnp.arange(0, H),          # i
                            jnp.arange(2 * H, 4 * H)])  # g, o
    w_igo = jnp.asarray(w_ih, jnp.float32)[live, :]                      # (3H, I)
    b_col = ((jnp.asarray(b_ih, jnp.float32)
              + jnp.asarray(b_hh, jnp.float32))[live]
             .reshape(3 * H, 1))                                         # (3H, 1)
    return (w_igo,
            b_col,
            jnp.asarray(w_lin, jnp.float32),                             # (1, H)
            jnp.asarray(b_lin, jnp.float32).reshape(1,))                 # (1,) -> SMEM


def _round_up(v, m):
    return -(-v // m) * m


def _tile_and_pad(batch):
    """Pick a lane-dense batch tile and the padded batch size.

    - tiles are multiples of 128 (lane-dense output stores, no masked tails)
    - B is padded up to a multiple of the tile (pipelining always on, no
      full-array fallback that could blow scoped VMEM for odd large B)
    - >= 2 grid steps whenever B > 128 so the "parallel" axis shards across
      both v7x TensorCores
    - tile capped at MAX_BATCH_TILE to stay under the default scoped VMEM
    """
    if batch <= 128:
        return 128, 128
    n_steps = max(2, _round_up(batch, MAX_BATCH_TILE) // MAX_BATCH_TILE)
    bt = min(MAX_BATCH_TILE, _round_up(_round_up(batch, n_steps) // n_steps, 128))
    padded = _round_up(batch, bt)
    return bt, padded


@jax.jit
def lstm_forward(x, params):
    """x: (B, input_size) float32, params from prepare_params -> (B, 1)."""
    w_igo, b_col, w_lin, b_lin = params
    x = jnp.asarray(x, jnp.float32)
    B = x.shape[0]
    bt, padded = _tile_and_pad(B)
    if padded != B:
        x = jnp.pad(x, ((0, padded - B), (0, 0)))
    grid = (padded // bt,)

    out_t = pl.pallas_call(
        lstm_kernel,
        out_shape=jax.ShapeDtypeStruct((OUTPUT_SIZE, padded), jnp.float32),
        grid_spec=pltpu.PrefetchScalarGridSpec(
            num_scalar_prefetch=0,
            grid=grid,
            in_specs=[
                # batch-tiled activations (natural (B, I) layout)
                pl.BlockSpec((bt, INPUT_SIZE), lambda j: (j, 0)),
                # weights: constant index_map -> resident across grid steps
                pl.BlockSpec((3 * HIDDEN_SIZE, INPUT_SIZE), lambda j: (0, 0)),
                pl.BlockSpec((3 * HIDDEN_SIZE, 1), lambda j: (0, 0)),
                pl.BlockSpec((OUTPUT_SIZE, HIDDEN_SIZE), lambda j: (0, 0)),
                # scalar output bias on the scalar path
                pl.BlockSpec(memory_space=pltpu.MemorySpace.SMEM),
            ],
            out_specs=pl.BlockSpec((OUTPUT_SIZE, bt), lambda j: (0, j)),
        ),
        compiler_params=pltpu.CompilerParams(
            dimension_semantics=("parallel",)),
    )(x, w_igo, b_col, w_lin, b_lin)

    # Kernel emits a lane-dense (1, padded); drop the pad tail and flip to (B, 1).
    return out_t[:, :B].T


def lstm_reference(x, w_ih, w_hh, b_ih, b_hh, w_lin, b_lin):
    """Pure-JAX reference matching torch semantics (seq_len=1, h0=c0=0)."""
    gates = x @ w_ih.T + b_ih + b_hh
    H = HIDDEN_SIZE
    i_g = jax.nn.sigmoid(gates[:, 0 * H:1 * H])
    g_g = jnp.tanh(gates[:, 2 * H:3 * H])
    o_g = jax.nn.sigmoid(gates[:, 3 * H:4 * H])
    h = o_g * jnp.tanh(i_g * g_g)
    return h @ w_lin.T + b_lin


if __name__ == "__main__":
    key = jax.random.PRNGKey(0)
    kx, k1, k2, k3, k4, k5, k6 = jax.random.split(key, 7)

    B = 2
    # Deterministic parameter init, uniform(-1/sqrt(H), 1/sqrt(H)) like PyTorch.
    bound = 1.0 / jnp.sqrt(jnp.float32(HIDDEN_SIZE))
    w_ih = jax.random.uniform(k1, (4 * HIDDEN_SIZE, INPUT_SIZE),
                              jnp.float32, -bound, bound)
    w_hh = jax.random.uniform(k2, (4 * HIDDEN_SIZE, HIDDEN_SIZE),
                              jnp.float32, -bound, bound)
    b_ih = jax.random.uniform(k3, (4 * HIDDEN_SIZE,), jnp.float32, -bound, bound)
    b_hh = jax.random.uniform(k4, (4 * HIDDEN_SIZE,), jnp.float32, -bound, bound)
    w_lin = jax.random.uniform(k5, (OUTPUT_SIZE, HIDDEN_SIZE),
                               jnp.float32, -bound, bound)
    b_lin = jax.random.uniform(k6, (OUTPUT_SIZE,), jnp.float32, -bound, bound)

    # Input consistent with x.view(len(x), 1, -1): (batch, input_size)
    x = jax.random.normal(kx, (B, INPUT_SIZE), jnp.float32)

    params = prepare_params(w_ih, w_hh, b_ih, b_hh, w_lin, b_lin)  # one-time
    out = lstm_forward(x, params)
    out = jax.block_until_ready(out)

    ref = lstm_reference(x, w_ih, w_hh, b_ih, b_hh, w_lin, b_lin)
    assert out.shape == (B, OUTPUT_SIZE)
    assert jnp.allclose(out, ref, atol=1e-5, rtol=1e-5)

    print("KERNEL_OK")
</pallas_src>

<mosaic_0001>
module attributes {stable_mosaic.version = 11 : i64} {
  func.func @lstm_kernel(%arg0: i32, %arg1: memref<128x18xf32, #tpu.memory_space<vmem>>, %arg2: memref<96x18xf32, #tpu.memory_space<vmem>>, %arg3: memref<96x1xf32, #tpu.memory_space<vmem>>, %arg4: memref<1x32xf32, #tpu.memory_space<vmem>>, %arg5: memref<1xf32, #tpu.memory_space<smem>>, %arg6: memref<1x128xf32, #tpu.memory_space<vmem>>) attributes {dimension_semantics = [#tpu.dimension_semantics<parallel>], iteration_bounds = array<i64: 1>, scalar_prefetch = 0 : i64, scratch_operands = 0 : i64, tpu.core_type = #tpu.core_type<tc>, window_params = [{transform_indices = @transform_0, window_bounds = array<i64: 128, 18>}, {pipeline_mode = #tpu.pipeline_mode<synchronous>, transform_indices = @transform_1, window_bounds = array<i64: 96, 18>}, {pipeline_mode = #tpu.pipeline_mode<synchronous>, transform_indices = @transform_2, window_bounds = array<i64: 96, 1>}, {pipeline_mode = #tpu.pipeline_mode<synchronous>, transform_indices = @transform_3, window_bounds = array<i64: 1, 32>}, {transform_indices = @transform_4, window_bounds = array<i64: 1>}, {transform_indices = @transform_5, window_bounds = array<i64: 1, 128>}]} {
    %c0 = arith.constant 0 : index
    %c0_0 = arith.constant 0 : index
    %0 = vector.load %arg2[%c0, %c0_0] : memref<96x18xf32, #tpu.memory_space<vmem>>, vector<96x18xf32>
    %c0_1 = arith.constant 0 : index
    %c0_2 = arith.constant 0 : index
    %1 = vector.load %arg1[%c0_1, %c0_2] : memref<128x18xf32, #tpu.memory_space<vmem>>, vector<128x18xf32>
    %cst = arith.constant dense<0.000000e+00> : vector<96x128xf32>
    %2 = tpu.matmul %0, %1, %cst {dimension_numbers = #tpu.dot_dimension_numbers<[1], [1], [0], [0], [0, 0, 1, 0], [], []>} : vector<96x18xf32>, vector<128x18xf32>, vector<96x128xf32> -> vector<96x128xf32>
    %c0_3 = arith.constant 0 : index
    %c0_4 = arith.constant 0 : index
    %3 = vector.load %arg3[%c0_3, %c0_4] : memref<96x1xf32, #tpu.memory_space<vmem>>, vector<96x1xf32>
    %4 = vector.broadcast %3 : vector<96x1xf32> to vector<96x128xf32>
    %5 = arith.addf %2, %4 : vector<96x128xf32>
    %6 = vector.extract_strided_slice %5 {offsets = [0, 0], sizes = [32, 128], strides = [1, 1]} : vector<96x128xf32> to vector<32x128xf32>
    %cst_5 = arith.constant 5.000000e-01 : f32
    %7 = vector.broadcast %cst_5 : f32 to vector<32x128xf32>
    %8 = arith.mulf %7, %6 : vector<32x128xf32>
    %9 = math.tanh %8 : vector<32x128xf32>
    %cst_6 = arith.constant 5.000000e-01 : f32
    %10 = vector.broadcast %cst_6 : f32 to vector<32x128xf32>
    %11 = arith.mulf %10, %9 : vector<32x128xf32>
    %cst_7 = arith.constant 5.000000e-01 : f32
    %12 = vector.broadcast %cst_7 : f32 to vector<32x128xf32>
    %13 = arith.addf %11, %12 : vector<32x128xf32>
    %14 = vector.extract_strided_slice %5 {offsets = [32, 0], sizes = [32, 128], strides = [1, 1]} : vector<96x128xf32> to vector<32x128xf32>
    %15 = math.tanh %14 : vector<32x128xf32>
    %16 = vector.extract_strided_slice %5 {offsets = [64, 0], sizes = [32, 128], strides = [1, 1]} : vector<96x128xf32> to vector<32x128xf32>
    %cst_8 = arith.constant 5.000000e-01 : f32
    %17 = vector.broadcast %cst_8 : f32 to vector<32x128xf32>
    %18 = arith.mulf %17, %16 : vector<32x128xf32>
    %19 = math.tanh %18 : vector<32x128xf32>
    %cst_9 = arith.constant 5.000000e-01 : f32
    %20 = vector.broadcast %cst_9 : f32 to vector<32x128xf32>
    %21 = arith.mulf %20, %19 : vector<32x128xf32>
    %cst_10 = arith.constant 5.000000e-01 : f32
    %22 = vector.broadcast %cst_10 : f32 to vector<32x128xf32>
    %23 = arith.addf %21, %22 : vector<32x128xf32>
    %24 = arith.mulf %13, %15 : vector<32x128xf32>
    %25 = math.tanh %24 : vector<32x128xf32>
    %26 = arith.mulf %23, %25 : vector<32x128xf32>
    %c0_11 = arith.constant 0 : index
    %c0_12 = arith.constant 0 : index
    %27 = vector.load %arg4[%c0_11, %c0_12] : memref<1x32xf32, #tpu.memory_space<vmem>>, vector<1x32xf32>
    %cst_13 = arith.constant dense<0.000000e+00> : vector<1x128xf32>
    %28 = tpu.matmul %27, %26, %cst_13 {dimension_numbers = #tpu.dot_dimension_numbers<[1], [0], [0], [1], [0, 0, 1, 1], [], []>} : vector<1x32xf32>, vector<32x128xf32>, vector<1x128xf32> -> vector<1x128xf32>
    %c0_14 = arith.constant 0 : index
    %29 = memref.load %arg5[%c0_14] : memref<1xf32, #tpu.memory_space<smem>>
    %30 = vector.broadcast %29 : f32 to vector<1x128xf32>
    %31 = arith.addf %28, %30 : vector<1x128xf32>
    %c0_15 = arith.constant 0 : index
    %c0_16 = arith.constant 0 : index
    %32 = vector.load %arg6[%c0_15, %c0_16] : memref<1x128xf32, #tpu.memory_space<vmem>>, vector<1x128xf32>
    tpu.vector_store %arg6[%c0_15, %c0_16], %31 {strides = array<i32>} : memref<1x128xf32, #tpu.memory_space<vmem>>, vector<1x128xf32>,
    return
  }
  func.func @transform_0(%arg0: i32) -> (i32, i32) {
    %c0_i32 = arith.constant 0 : i32
    %c0_i32_0 = arith.constant 0 : i32
    return %arg0, %c0_i32 : i32, i32
  }
  func.func @transform_1(%arg0: i32) -> (i32, i32) {
    %c0_i32 = arith.constant 0 : i32
    %c0_i32_0 = arith.constant 0 : i32
    %c0_i32_1 = arith.constant 0 : i32
    return %c0_i32, %c0_i32_0 : i32, i32
  }
  func.func @transform_2(%arg0: i32) -> (i32, i32) {
    %c0_i32 = arith.constant 0 : i32
    %c0_i32_0 = arith.constant 0 : i32
    %c0_i32_1 = arith.constant 0 : i32
    return %c0_i32, %c0_i32_0 : i32, i32
  }
  func.func @transform_3(%arg0: i32) -> (i32, i32) {
    %c0_i32 = arith.constant 0 : i32
    %c0_i32_0 = arith.constant 0 : i32
    %c0_i32_1 = arith.constant 0 : i32
    return %c0_i32, %c0_i32_0 : i32, i32
  }
  func.func @transform_4(%arg0: i32) -> i32 {
    %c0_i32 = arith.constant 0 : i32
    %c0_i32_0 = arith.constant 0 : i32
    return %c0_i32 : i32
  }
  func.func @transform_5(%arg0: i32) -> (i32, i32) {
    %c0_i32 = arith.constant 0 : i32
    %c0_i32_0 = arith.constant 0 : i32
    return %c0_i32, %arg0 : i32, i32
  }
}

</mosaic_0001>

<llo_original>
// kernel: lstm_forward.1
$region0: #{lstm_forward.1}
  #allocation0 [shape = 'u32[]', space=smem, size = 0x4, offset = 0x4, fixed_abs, tag = 'smem constant byte address 0x4 - core index']
  #allocation1 [shape = 'u32[144,128]{1,0:T(1,128)}', space=vmem, size = 0x12000, scoped, tag = 'internal scratch']
  #allocation2 [shape = 'f32[1]{0:T(128)S(6)}', space=smem, size = 0x200, scoped, tag = 'scoped memory for lstm_forward.1']
  %s0 = inlined_call_operand.vmem [shape: f32[128,18], index: 0, kind: input, shape index: {}]
  %s1 = inlined_call_operand.vmem [shape: f32[96,18], index: 1, kind: input, shape index: {}]
  %s2 = inlined_call_operand.vmem [shape: f32[96,1], index: 2, kind: input, shape index: {}]
  %s3 = inlined_call_operand.vmem [shape: f32[1,32], index: 3, kind: input, shape index: {}]
  %s4 = inlined_call_operand.<no memory space> [shape: f32[1], index: 4, kind: input, shape index: {}]
  %s5 = inlined_call_operand.vmem [shape: f32[1,128], index: 5, kind: output, shape index: {}]
  %s6 = sld [smem:[#allocation0]]
  $region30: #{lstm_forward.1} parent=0
    _
  %s8 = ssub.s32 1, %s6
  %s9 = scalar_select 0, %s8, %s6
  %10 = sst [smem:[#allocation2]] %s4
  // Predicated region
  $region2: #{lstm_forward.1} parent=0 // pred_check
    _
  $region3: #{lstm_forward.1} parent=0 // pred_check_branch
    %12 = sbr.rel (0) target = $region5
  $region4: #{lstm_forward.1} parent=0 // pred_region
    _
  $region5: #{lstm_forward.1} parent=0 // pred_fallthru
    _
  // Predicated region
  $region6: #{lstm_forward.1} parent=0 // pred_check
    _
  $region7: #{lstm_forward.1} parent=0 // pred_check_branch
    %14 = sbr.rel (0) target = $region9
  $region8: #{lstm_forward.1} parent=0 // pred_region
    _
  $region9: #{lstm_forward.1} parent=0 // pred_fallthru
    _
  // Predicated region
  $region10: #{lstm_forward.1} parent=0 // pred_check
    _
  $region11: #{lstm_forward.1} parent=0 // pred_check_branch
    %16 = sbr.rel (0) target = $region13
  $region12: #{lstm_forward.1} parent=0 // pred_region
    _
  $region13: #{lstm_forward.1} parent=0 // pred_fallthru
    _
  // Predicated region
  $region14: #{lstm_forward.1} parent=0 // pred_check
    _
  $region15: #{lstm_forward.1} parent=0 // pred_check_branch
    %18 = sbr.rel (0) target = $region17
  $region16: #{lstm_forward.1} parent=0 // pred_region
    _
  $region17: #{lstm_forward.1} parent=0 // pred_fallthru
    _
  // Predicated region
  $region18: #{lstm_forward.1} parent=0 // pred_check
    _
  $region19: #{lstm_forward.1} parent=0 // pred_check_branch
    %20 = sbr.rel (0) target = $region21
  $region20: #{lstm_forward.1} parent=0 // pred_region
    _
  $region21: #{lstm_forward.1} parent=0 // pred_fallthru
    _
  %v21 = vld [vmem:[%s1] sm:$0xff]
  %v22 = vld [vmem:[%s1 + $0x8] sm:$0xff]
  %v23 = vld [vmem:[%s1 + $0x10] sm:$0xff]
  %v24 = vld [vmem:[%s1 + $0x18] sm:$0xff]
  %v25 = vld [vmem:[%s1 + $0x20] sm:$0xff]
  %v26 = vld [vmem:[%s1 + $0x28] sm:$0xff]
  %v27 = vld [vmem:[%s1 + $0x30] sm:$0xff]
  %v28 = vld [vmem:[%s1 + $0x38] sm:$0xff]
  %v29 = vld [vmem:[%s1 + $0x40] sm:$0xff]
  %v30 = vld [vmem:[%s1 + $0x48] sm:$0xff]
  %v31 = vld [vmem:[%s1 + $0x50] sm:$0xff]
  %v32 = vld [vmem:[%s1 + $0x58] sm:$0xff]
  %v33 = vld [vmem:[%s0] sm:$0xff]
  %v34 = vld [vmem:[%s0 + $0x8] sm:$0xff]
  %v35 = vld [vmem:[%s0 + $0x10] sm:$0xff]
  %v36 = vld [vmem:[%s0 + $0x18] sm:$0xff]
  %v37 = vld [vmem:[%s0 + $0x20] sm:$0xff]
  %v38 = vld [vmem:[%s0 + $0x28] sm:$0xff]
  %v39 = vld [vmem:[%s0 + $0x30] sm:$0xff]
  %v40 = vld [vmem:[%s0 + $0x38] sm:$0xff]
  %v41 = vld [vmem:[%s0 + $0x40] sm:$0xff]
  %v42 = vld [vmem:[%s0 + $0x48] sm:$0xff]
  %v43 = vld [vmem:[%s0 + $0x50] sm:$0xff]
  %v44 = vld [vmem:[%s0 + $0x58] sm:$0xff]
  %v45 = vld [vmem:[%s0 + $0x60] sm:$0xff]
  %v46 = vld [vmem:[%s0 + $0x68] sm:$0xff]
  %v47 = vld [vmem:[%s0 + $0x70] sm:$0xff]
  %v48 = vld [vmem:[%s0 + $0x78] sm:$0xff]
  %v49 = vld [vmem:[%s2] sm:$0xff]
  %v50 = vld [vmem:[%s2 + $0x8] sm:$0xff]
  %v51 = vld [vmem:[%s2 + $0x10] sm:$0xff]
  %v52 = vld [vmem:[%s2 + $0x18] sm:$0xff]
  %v53 = vld [vmem:[%s2 + $0x20] sm:$0xff]
  %v54 = vld [vmem:[%s2 + $0x28] sm:$0xff]
  %v55 = vld [vmem:[%s2 + $0x30] sm:$0xff]
  %v56 = vld [vmem:[%s2 + $0x38] sm:$0xff]
  %v57 = vld [vmem:[%s2 + $0x40] sm:$0xff]
  %v58 = vld [vmem:[%s2 + $0x48] sm:$0xff]
  %v59 = vld [vmem:[%s2 + $0x50] sm:$0xff]
  %v60 = vld [vmem:[%s2 + $0x58] sm:$0xff]
  %62 = vset.pattern.permute.xlu0 0
  %63 = vperm.xlu0 %62, %v49
  %v64 = vpop.permute.xlu0 %63
  %67 = vset.pattern.permute.xlu0 0
  %68 = vperm.xlu0 %67, %v50
  %v69 = vpop.permute.xlu0 %68
  %72 = vset.pattern.permute.xlu0 0
  %73 = vperm.xlu0 %72, %v51
  %v74 = vpop.permute.xlu0 %73
  %77 = vset.pattern.permute.xlu0 0
  %78 = vperm.xlu0 %77, %v52
  %v79 = vpop.permute.xlu0 %78
  %82 = vset.pattern.permute.xlu0 0
  %83 = vperm.xlu0 %82, %v53
  %v84 = vpop.permute.xlu0 %83
  %87 = vset.pattern.permute.xlu0 0
  %88 = vperm.xlu0 %87, %v54
  %v89 = vpop.permute.xlu0 %88
  %92 = vset.pattern.permute.xlu0 0
  %93 = vperm.xlu0 %92, %v55
  %v94 = vpop.permute.xlu0 %93
  %97 = vset.pattern.permute.xlu0 0
  %98 = vperm.xlu0 %97, %v56
  %v99 = vpop.permute.xlu0 %98
  %102 = vset.pattern.permute.xlu0 0
  %103 = vperm.xlu0 %102, %v57
  %v104 = vpop.permute.xlu0 %103
  %107 = vset.pattern.permute.xlu0 0
  %108 = vperm.xlu0 %107, %v58
  %v109 = vpop.permute.xlu0 %108
  %112 = vset.pattern.permute.xlu0 0
  %113 = vperm.xlu0 %112, %v59
  %v114 = vpop.permute.xlu0 %113
  %117 = vset.pattern.permute.xlu0 0
  %118 = vperm.xlu0 %117, %v60
  %v119 = vpop.permute.xlu0 %118
  %vm121 = vcmask 146432
  %v123 = vsel %vm121, %v21, 0
  %v126 = vsel %vm121, %v22, 0
  %v129 = vsel %vm121, %v23, 0
  %v132 = vsel %vm121, %v24, 0
  %v135 = vsel %vm121, %v25, 0
  %v138 = vsel %vm121, %v26, 0
  %v141 = vsel %vm121, %v27, 0
  %v144 = vsel %vm121, %v28, 0
  %v147 = vsel %vm121, %v29, 0
  %v150 = vsel %vm121, %v30, 0
  %v153 = vsel %vm121, %v31, 0
  %v156 = vsel %vm121, %v32, 0
  %v159 = vsel %vm121, %v33, 0
  %v162 = vsel %vm121, %v34, 0
  %v165 = vsel %vm121, %v35, 0
  %v168 = vsel %vm121, %v36, 0
  %v171 = vsel %vm121, %v37, 0
  %v174 = vsel %vm121, %v38, 0
  %v177 = vsel %vm121, %v39, 0
  %v180 = vsel %vm121, %v40, 0
  %v183 = vsel %vm121, %v41, 0
  %v186 = vsel %vm121, %v42, 0
  %v189 = vsel %vm121, %v43, 0
  %v192 = vsel %vm121, %v44, 0
  %v195 = vsel %vm121, %v45, 0
  %v198 = vsel %vm121, %v46, 0
  %v201 = vsel %vm121, %v47, 0
  %v204 = vsel %vm121, %v48, 0
  %206 = vmatprep.subr.mxu0 0.0
  %207 = vmatpush1.xpose.msra.mxu0 %v159
  %208 = vmatprep.subr.mxu0 0.0
  %209 = vmatpush1.xpose.msra.mxu0 %v162
  %210 = vmatprep.subr.mxu0 0.0
  %211 = vmatpush1.xpose.msra.mxu0 %v165
  %212 = vmatprep.subr.mxu0 0.0
  %213 = vmatpush1.xpose.msra.mxu0 %v168
  %214 = vmatprep.subr.mxu0 0.0
  %215 = vmatpush1.xpose.msra.mxu0 %v171
  %216 = vmatprep.subr.mxu0 0.0
  %217 = vmatpush1.xpose.msra.mxu0 %v174
  %218 = vmatprep.subr.mxu0 0.0
  %219 = vmatpush1.xpose.msra.mxu0 %v177
  %220 = vmatprep.subr.mxu0 0.0
  %221 = vmatpush1.xpose.msra.mxu0 %v180
  %222 = vmatprep.subr.mxu0 0.0
  %223 = vmatpush1.xpose.msra.mxu0 %v183
  %224 = vmatprep.subr.mxu0 0.0
  %225 = vmatpush1.xpose.msra.mxu0 %v186
  %226 = vmatprep.subr.mxu0 0.0
  %227 = vmatpush1.xpose.msra.mxu0 %v189
  %228 = vmatprep.subr.mxu0 0.0
  %229 = vmatpush1.xpose.msra.mxu0 %v192
  %230 = vmatprep.subr.mxu0 0.0
  %231 = vmatpush1.xpose.msra.mxu0 %v195
  %232 = vmatprep.subr.mxu0 0.0
  %233 = vmatpush1.xpose.msra.mxu0 %v198
  %234 = vmatprep.subr.mxu0 0.0
  %235 = vmatpush1.xpose.msra.mxu0 %v201
  %236 = vmatprep.subr.mxu0 0.0
  %237 = vmatpush1.xpose.msra.mxu0 %v204
  %238 = vmatprep.subr.mxu0 0.0
  %239 = vmatpush1.xpose.msra.mxu0 0.0
  %240 = vmatprep.subr.mxu0 0.0
  %241 = vmatpush1.xpose.msra.mxu0 0.0
  %242 = vmatprep.subr.mxu0 0.0
  %243 = vmatpush1.xpose.msra.mxu0 0.0
  %244 = vmatprep.subr.mxu0 0.0
  %245 = vmatpush1.xpose.msra.mxu0 0.0
  %246 = vmatprep.subr.mxu0 0.0
  %247 = vmatpush1.xpose.msra.mxu0 0.0
  %248 = vmatprep.subr.mxu0 0.0
  %249 = vmatpush1.xpose.msra.mxu0 0.0
  %250 = vmatprep.subr.mxu0 0.0
  %251 = vmatpush1.xpose.msra.mxu0 0.0
  %252 = vmatprep.subr.mxu0 0.0
  %253 = vmatpush1.xpose.msra.mxu0 0.0
  %254 = vmatprep.subr.mxu0 0.0
  %255 = vmatpush1.xpose.msra.mxu0 0.0
  %256 = vmatprep.subr.mxu0 0.0
  %257 = vmatpush1.xpose.msra.mxu0 0.0
  %258 = vmatprep.subr.mxu0 0.0
  %259 = vmatpush1.xpose.msra.mxu0 0.0
  %260 = vmatprep.subr.mxu0 0.0
  %261 = vmatpush1.xpose.msra.mxu0 0.0
  %262 = vmatprep.subr.mxu0 0.0
  %263 = vmatpush1.xpose.msra.mxu0 0.0
  %264 = vmatprep.subr.mxu0 0.0
  %265 = vmatpush1.xpose.msra.mxu0 0.0
  %266 = vmatprep.subr.mxu0 0.0
  %267 = vmatpush1.xpose.msra.mxu0 0.0
  %268 = vmatprep.subr.mxu0 0.0
  %269 = vmatpush1.xpose.msra.mxu0 0.0
  %270 = vmatprep.mubr.f32.mxu0 0.0
  %271 = vmatmul.mubr.f32.gmra.mrb[0].mxu0 %v123
  %v272 = vpop.f32.mrb[0].mxu0
  %v273 = vadd.f32 %v64, %v272
  %v274 = vpop.f32.mrb[0].mxu0
  %275 = vmatprep.mubr.f32.mxu0 0.0
  %276 = vmatmul.mubr.f32.gmra.mrb[0].mxu0 %v126
  %v277 = vpop.f32.mrb[0].mxu0
  %v278 = vadd.f32 %v69, %v277
  %v279 = vpop.f32.mrb[0].mxu0
  %280 = vmatprep.mubr.f32.mxu0 0.0
  %281 = vmatmul.mubr.f32.gmra.mrb[0].mxu0 %v129
  %v282 = vpop.f32.mrb[0].mxu0
  %v283 = vadd.f32 %v74, %v282
  %v284 = vpop.f32.mrb[0].mxu0
  %285 = vmatprep.mubr.f32.mxu0 0.0
  %286 = vmatmul.mubr.f32.gmra.mrb[0].mxu0 %v132
  %v287 = vpop.f32.mrb[0].mxu0
  %v288 = vadd.f32 %v79, %v287
  %v289 = vpop.f32.mrb[0].mxu0
  %290 = vmatprep.mubr.f32.mxu0 0.0
  %291 = vmatmul.mubr.f32.gmra.mrb[0].mxu0 %v135
  %v292 = vpop.f32.mrb[0].mxu0
  %v293 = vadd.f32 %v84, %v292
  %v294 = vpop.f32.mrb[0].mxu0
  %295 = vmatprep.mubr.f32.mxu0 0.0
  %296 = vmatmul.mubr.f32.gmra.mrb[0].mxu0 %v138
  %v297 = vpop.f32.mrb[0].mxu0
  %v298 = vadd.f32 %v89, %v297
  %v299 = vpop.f32.mrb[0].mxu0
  %300 = vmatprep.mubr.f32.mxu0 0.0
  %301 = vmatmul.mubr.f32.gmra.mrb[0].mxu0 %v141
  %v302 = vpop.f32.mrb[0].mxu0
  %v303 = vadd.f32 %v94, %v302
  %v304 = vpop.f32.mrb[0].mxu0
  %305 = vmatprep.mubr.f32.mxu0 0.0
  %306 = vmatmul.mubr.f32.gmra.mrb[0].mxu0 %v144
  %v307 = vpop.f32.mrb[0].mxu0
  %v308 = vadd.f32 %v99, %v307
  %v309 = vpop.f32.mrb[0].mxu0
  %310 = vmatprep.mubr.f32.mxu0 0.0
  %311 = vmatmul.mubr.f32.gmra.mrb[0].mxu0 %v147
  %v312 = vpop.f32.mrb[0].mxu0
  %v313 = vadd.f32 %v104, %v312
  %v314 = vpop.f32.mrb[0].mxu0
  %315 = vmatprep.mubr.f32.mxu0 0.0
  %316 = vmatmul.mubr.f32.gmra.mrb[0].mxu0 %v150
  %v317 = vpop.f32.mrb[0].mxu0
  %v318 = vadd.f32 %v109, %v317
  %v319 = vpop.f32.mrb[0].mxu0
  %320 = vmatprep.mubr.f32.mxu0 0.0
  %321 = vmatmul.mubr.f32.gmra.mrb[0].mxu0 %v153
  %v322 = vpop.f32.mrb[0].mxu0
  %v323 = vadd.f32 %v114, %v322
  %v324 = vpop.f32.mrb[0].mxu0
  %325 = vmatprep.mubr.f32.mxu0 0.0
  %326 = vmatmul.mubr.f32.gmra.mrb[0].mxu0 %v156
  %v327 = vpop.f32.mrb[0].mxu0
  %v328 = vadd.f32 %v119, %v327
  %v329 = vpop.f32.mrb[0].mxu0
  %330 = vdwg.mxu0
  %v331 = vmul.f32 %v273, 0.5
  %v332 = vmul.f32 %v278, 0.5
  %v333 = vmul.f32 %v283, 0.5
  %v334 = vmul.f32 %v288, 0.5
  %v335 = vtanh.pop %v331
  %v336 = vtanh.pop %v332
  %v337 = vtanh.pop %v333
  %v338 = vtanh.pop %v334
  %v339 = vmul.f32 %v335, 0.5
  %v340 = vmul.f32 %v336, 0.5
  %v341 = vmul.f32 %v337, 0.5
  %v342 = vmul.f32 %v338, 0.5
  %v343 = vadd.f32 %v339, 0.5
  %v344 = vadd.f32 %v340, 0.5
  %v345 = vadd.f32 %v341, 0.5
  %v346 = vadd.f32 %v342, 0.5
  %v347 = vtanh.pop %v293
  %v348 = vtanh.pop %v298
  %v349 = vtanh.pop %v303
  %v350 = vtanh.pop %v308
  %v351 = vmul.f32 %v313, 0.5
  %v352 = vmul.f32 %v318, 0.5
  %v353 = vmul.f32 %v323, 0.5
  %v354 = vmul.f32 %v328, 0.5
  %v355 = vtanh.pop %v351
  %v356 = vtanh.pop %v352
  %v357 = vtanh.pop %v353
  %v358 = vtanh.pop %v354
  %v359 = vmul.f32 %v355, 0.5
  %v360 = vmul.f32 %v356, 0.5
  %v361 = vmul.f32 %v357, 0.5
  %v362 = vmul.f32 %v358, 0.5
  %v363 = vadd.f32 %v359, 0.5
  %v364 = vadd.f32 %v360, 0.5
  %v365 = vadd.f32 %v361, 0.5
  %v366 = vadd.f32 %v362, 0.5
  %v367 = vmul.f32 %v343, %v347
  %v368 = vmul.f32 %v344, %v348
  %v369 = vmul.f32 %v345, %v349
  %v370 = vmul.f32 %v346, %v350
  %v371 = vtanh.pop %v367
  %v372 = vtanh.pop %v368
  %v373 = vtanh.pop %v369
  %v374 = vtanh.pop %v370
  %v375 = vmul.f32 %v363, %v371
  %v376 = vmul.f32 %v364, %v372
  %v377 = vmul.f32 %v365, %v373
  %v378 = vmul.f32 %v366, %v374
  %v379 = vld [vmem:[%s3] sm:$0x1]
  %s380 = sld [smem:[#allocation2]]
  %v381 = vstv %s380
  %vm382 = vcmask 261120
  %v384 = vsel %vm382, %v379, 0
  %386 = vmatprep.subr.mxu0 0.0
  %387 = vmatpush1.msra.mxu0 %v375
  %388 = vmatprep.subr.mxu0 0.0
  %389 = vmatpush1.msra.mxu0 %v376
  %390 = vmatprep.subr.mxu0 0.0
  %391 = vmatpush1.msra.mxu0 %v377
  %392 = vmatprep.subr.mxu0 0.0
  %393 = vmatpush1.msra.mxu0 %v378
  %394 = vmatprep.subr.mxu0 0.0
  %395 = vmatpush1.msra.mxu0 0.0
  %396 = vmatprep.subr.mxu0 0.0
  %397 = vmatpush1.msra.mxu0 0.0
  %398 = vmatprep.subr.mxu0 0.0
  %399 = vmatpush1.msra.mxu0 0.0
  %400 = vmatprep.subr.mxu0 0.0
  %401 = vmatpush1.msra.mxu0 0.0
  %402 = vmatprep.subr.mxu0 0.0
  %403 = vmatpush1.msra.mxu0 0.0
  %404 = vmatprep.subr.mxu0 0.0
  %405 = vmatpush1.msra.mxu0 0.0
  %406 = vmatprep.subr.mxu0 0.0
  %407 = vmatpush1.msra.mxu0 0.0
  %408 = vmatprep.subr.mxu0 0.0
  %409 = vmatpush1.msra.mxu0 0.0
  %410 = vmatprep.subr.mxu0 0.0
  %411 = vmatpush1.msra.mxu0 0.0
  %412 = vmatprep.subr.mxu0 0.0
  %413 = vmatpush1.msra.mxu0 0.0
  %414 = vmatprep.subr.mxu0 0.0
  %415 = vmatpush1.msra.mxu0 0.0
  %416 = vmatprep.subr.mxu0 0.0
  %417 = vmatpush1.msra.mxu0 0.0
  %418 = vmatprep.subr.mxu0 0.0
  %419 = vmatpush1.msra.mxu0 0.0
  %420 = vmatprep.subr.mxu0 0.0
  %421 = vmatpush1.msra.mxu0 0.0
  %422 = vmatprep.subr.mxu0 0.0
  %423 = vmatpush1.msra.mxu0 0.0
  %424 = vmatprep.subr.mxu0 0.0
  %425 = vmatpush1.msra.mxu0 0.0
  %426 = vmatprep.subr.mxu0 0.0
  %427 = vmatpush1.msra.mxu0 0.0
  %428 = vmatprep.subr.mxu0 0.0
  %429 = vmatpush1.msra.mxu0 0.0
  %430 = vmatprep.subr.mxu0 0.0
  %431 = vmatpush1.msra.mxu0 0.0
  %432 = vmatprep.subr.mxu0 0.0
  %433 = vmatpush1.msra.mxu0 0.0
  %434 = vmatprep.subr.mxu0 0.0
  %435 = vmatpush1.msra.mxu0 0.0
  %436 = vmatprep.subr.mxu0 0.0
  %437 = vmatpush1.msra.mxu0 0.0
  %438 = vmatprep.subr.mxu0 0.0
  %439 = vmatpush1.msra.mxu0 0.0
  %440 = vmatprep.subr.mxu0 0.0
  %441 = vmatpush1.msra.mxu0 0.0
  %442 = vmatprep.subr.mxu0 0.0
  %443 = vmatpush1.msra.mxu0 0.0
  %444 = vmatprep.subr.mxu0 0.0
  %445 = vmatpush1.msra.mxu0 0.0
  %446 = vmatprep.subr.mxu0 0.0
  %447 = vmatpush1.msra.mxu0 0.0
  %448 = vmatprep.subr.mxu0 0.0
  %449 = vmatpush1.msra.mxu0 0.0
  %450 = vmatprep.mubr.f32.mxu0 0.0
  %451 = vmatmul.mubr.f32.gmra.mrb[0].mxu0 %v384
  %v452 = vpop.f32.mrb[0].mxu0
  %v453 = vadd.f32 %v381, %v452
  %v454 = vpop.f32.mrb[0].mxu0
  %455 = vdwg.mxu0
  %456 = vst [vmem:[%s5] sm:$0x1] %v453
  // Predicated region
  $region22: #{lstm_forward.1} parent=0 // pred_check
    _
  $region23: #{lstm_forward.1} parent=0 // pred_check_branch
    %458 = sbr.rel (0) target = $region25
  $region24: #{lstm_forward.1} parent=0 // pred_region
    _
  $region25: #{lstm_forward.1} parent=0 // pred_fallthru
    _
  // Predicated region
  $region26: #{lstm_forward.1} parent=0 // pred_check
    _
  $region27: #{lstm_forward.1} parent=0 // pred_check_branch
    %460 = sbr.rel (0) target = $region29
  $region28: #{lstm_forward.1} parent=0 // pred_region
    _
  $region29: #{lstm_forward.1} parent=0 // pred_fallthru
    _

</llo_original>
